<compile_context>
chip_gen: v5e
topology: v5e:2x2
jax: 0.10.0
libtpu: 0.0.40
codegen_flags: <defaults>
</compile_context>

<pallas_src>
import functools

import jax
import jax.numpy as jnp
from jax import lax
from jax.experimental import pallas as pl
from jax.experimental.pallas import tpu as pltpu


def _one_conv_kernel(x_ref, mask_ref, w_ref, bias_ref, scale_ref, o_ref, *, W):
    # x_ref     : (Cp, L)       channel-padded input slab, L = imgs_per_block*H*W
    # mask_ref  : (8, L)        border masks for the 8 non-center 3x3 taps (0/1)
    # w_ref     : (Cgp+Cp, Kc)  rows [0,Cgp) = conv im2col W, rows [Cgp,..) = conv1
    # bias_ref  : (Cmax, 3)     columns: b1, PReLU alpha, b2 (zero-padded rows)
    # scale_ref : (2,) in SMEM  (scale1, scale2)
    # o_ref     : (Cp, L)
    Cp, L = x_ref.shape
    Cgp = w_ref.shape[0] - Cp

    x2d = x_ref[...]

    def shifted(img, tap):
        # Spatial shift by one 3x3 tap, zero at image borders, entirely in
        # registers: XLU roll along the flattened lane axis + VPU mask mul.
        dy = tap // 3 - 1
        dx = tap % 3 - 1
        off = dy * W + dx
        if off == 0:
            return img
        mrow = tap if tap < 4 else tap - 1          # center tap has no mask row
        rolled = pltpu.roll(img, (-off) % L, axis=1)
        return rolled * mask_ref[mrow:mrow + 1, :]

    # ---- conv (Cin -> Cg): ONE im2col matmul, K = 9*Cp ----
    x_patches = jnp.concatenate([shifted(x2d, t) for t in range(9)], axis=0)
    y = jnp.dot(w_ref[0:Cgp, 0:9 * Cp], x_patches,
                preferred_element_type=jnp.float32)              # (Cgp, L)
    y = y + bias_ref[0:Cgp, 0:1]

    # ---- PReLU (per first-conv output channel) ----
    alpha = bias_ref[0:Cgp, 1:2]
    y = jnp.where(y >= 0.0, y, alpha * y)

    # ---- conv1 (Cg -> Cin): ONE im2col matmul, K = 9*Cgp ----
    y_patches = jnp.concatenate([shifted(y, t) for t in range(9)], axis=0)
    z = jnp.dot(w_ref[Cgp:Cgp + Cp, 0:9 * Cgp], y_patches,
                preferred_element_type=jnp.float32)              # (Cp, L)
    z = z + bias_ref[0:Cp, 2:3]

    # ---- scaled residual combine (scales read as SMEM scalars) ----
    o_ref[...] = (scale_ref[0] * x2d + scale_ref[1] * z).astype(o_ref.dtype)


def _round_up(v, m):
    return (v + m - 1) // m * m


def _num_lane_blocks(n_images, hw):
    """1 grid step on single-TC chips; one block per image on dual-TC v7x."""
    try:
        kind = jax.devices()[0].device_kind.lower()
    except Exception:
        kind = ""
    blocks = n_images if "v7" in kind else 1
    lanes = n_images * hw
    if blocks < 1 or lanes % blocks != 0 or (lanes // blocks) % 128 != 0:
        blocks = 1
    return blocks


@functools.partial(jax.jit, static_argnames=("num_lane_blocks",))
def _one_conv_pallas(x_nchw, w1, b1, alpha, w2, b2, s1, s2, *, num_lane_blocks):
    N, Cin, H, W = x_nchw.shape
    Cg = w1.shape[0]
    HW = H * W
    L = N * HW
    L_blk = L // num_lane_blocks
    Cp = _round_up(Cin, 8)
    Cgp = _round_up(Cg, 8)
    Cmax = max(Cp, Cgp)
    Kc = 9 * max(Cp, Cgp)

    # Channel-major, lane-batched activation slab (Cp, N*H*W); pad channels w/ 0.
    x_cm = jnp.transpose(x_nchw, (1, 0, 2, 3)).reshape(Cin, L).astype(jnp.float32)
    x_cm = jnp.pad(x_cm, ((0, Cp - Cin), (0, 0)))

    # 3x3 border masks for the 8 non-center taps (one-time XLA prep, hoisted
    # out of the kernel).  Per-lane within-image position works for the
    # lane-batched layout too: any roll that would cross a row / image / block
    # boundary happens only at a masked border lane.
    pos = jnp.arange(L, dtype=jnp.int32) % HW
    hh = pos // W
    ww = pos % W
    rows = []
    for tap in range(9):
        if tap == 4:
            continue
        dy, dx = tap // 3 - 1, tap % 3 - 1
        valid = jnp.ones((L,), jnp.bool_)
        if dy < 0:
            valid = valid & (hh >= -dy)
        if dy > 0:
            valid = valid & (hh < H - dy)
        if dx < 0:
            valid = valid & (ww >= -dx)
        if dx > 0:
            valid = valid & (ww < W - dx)
        rows.append(valid)
    masks = jnp.stack(rows, axis=0).astype(jnp.float32)            # (8, L)

    # Packed im2col weight slab (single VMEM stream):
    #   rows [0, Cgp)      : w1m[cg, tap*Cp + ci]  = w1[cg, ci, ky, kx]
    #   rows [Cgp, Cgp+Cp) : w2m[ci, tap*Cgp + cg] = w2[ci, cg, ky, kx]
    w1m = jnp.transpose(w1, (0, 2, 3, 1)).reshape(Cg, 9, Cin)
    w1m = jnp.pad(w1m, ((0, Cgp - Cg), (0, 0), (0, Cp - Cin))).reshape(Cgp, 9 * Cp)
    w2m = jnp.transpose(w2, (0, 2, 3, 1)).reshape(Cin, 9, Cg)
    w2m = jnp.pad(w2m, ((0, Cp - Cin), (0, 0), (0, Cgp - Cg))).reshape(Cp, 9 * Cgp)
    w_pack = jnp.concatenate(
        [jnp.pad(w1m, ((0, 0), (0, Kc - 9 * Cp))),
         jnp.pad(w2m, ((0, 0), (0, Kc - 9 * Cgp)))], axis=0).astype(jnp.float32)

    # Packed bias / PReLU slab: columns = (b1, alpha, b2), zero-padded rows.
    bias_pack = jnp.zeros((Cmax, 3), jnp.float32)
    bias_pack = bias_pack.at[:Cg, 0].set(b1.astype(jnp.float32))
    bias_pack = bias_pack.at[:Cg, 1].set(alpha.astype(jnp.float32))
    bias_pack = bias_pack.at[:Cin, 2].set(b2.astype(jnp.float32))

    # Scale scalars go to SMEM (scalar loads, no VMEM vreg load + broadcast).
    scales = jnp.stack([jnp.asarray(s1, jnp.float32).reshape(()),
                        jnp.asarray(s2, jnp.float32).reshape(())])  # (2,)

    kernel = functools.partial(_one_conv_kernel, W=W)

    flops = 2 * L * 9 * (Cgp * Cp + Cp * Cgp)          # two fused im2col matmuls
    bytes_accessed = 4 * (2 * Cp * L + 8 * L + w_pack.size + bias_pack.size + 2)

    out_cm = pl.pallas_call(
        kernel,
        out_shape=jax.ShapeDtypeStruct((Cp, L), jnp.float32),
        grid=(num_lane_blocks,),
        in_specs=[
            pl.BlockSpec((Cp, L_blk), lambda b: (0, b)),
            pl.BlockSpec((8, L_blk), lambda b: (0, b)),
            pl.BlockSpec((Cgp + Cp, Kc), lambda b: (0, 0)),
            pl.BlockSpec((Cmax, 3), lambda b: (0, 0)),
            pl.BlockSpec(memory_space=pltpu.MemorySpace.SMEM),
        ],
        out_specs=pl.BlockSpec((Cp, L_blk), lambda b: (0, b)),
        compiler_params=pltpu.CompilerParams(
            dimension_semantics=("parallel",)),
        cost_estimate=pl.CostEstimate(
            flops=flops, transcendentals=0, bytes_accessed=bytes_accessed),
    )(x_cm, masks, w_pack, bias_pack, scales)

    # Drop padded channels, restore NCHW (free reshapes + tiny transpose).
    out = out_cm[:Cin].reshape(Cin, N, H, W)
    return jnp.transpose(out, (1, 0, 2, 3))


def one_conv_forward(x_nchw, w1, b1, alpha, w2, b2, s1, s2):
    """x_nchw: (N, Cin, H, W) float32.  Returns (N, Cin, H, W)."""
    N, _, H, W = x_nchw.shape
    blocks = _num_lane_blocks(N, H * W)
    return _one_conv_pallas(x_nchw, w1, b1, alpha, w2, b2, s1, s2,
                            num_lane_blocks=blocks)


def _reference_forward(x_nchw, w1, b1, alpha, w2, b2, s1, s2):
    """Pure-JAX reference matching the PyTorch semantics (NCHW)."""
    dn = ("NCHW", "OIHW", "NCHW")
    y = lax.conv_general_dilated(x_nchw, w1, (1, 1), "SAME",
                                 dimension_numbers=dn)
    y = y + b1[None, :, None, None]
    y = jnp.where(y >= 0, y, alpha[None, :, None, None] * y)   # PReLU
    z = lax.conv_general_dilated(y, w2, (1, 1), "SAME",
                                 dimension_numbers=dn)
    z = z + b2[None, :, None, None]
    return s1 * x_nchw + s2 * z


if __name__ == "__main__":
    # Small, deterministic configuration: one_conv(inchanels=4, growth_rate=8)
    N, Cin, H, W = 2, 4, 16, 16
    Cg = 8

    key = jax.random.PRNGKey(0)
    k_x, k_w1, k_b1, k_w2, k_b2 = jax.random.split(key, 5)

    x = jax.random.normal(k_x, (N, Cin, H, W), jnp.float32)

    # nn.Conv2d(Cin, Cg, 3): weight (Cg, Cin, 3, 3), bias (Cg,)
    w1 = 0.1 * jax.random.normal(k_w1, (Cg, Cin, 3, 3), jnp.float32)
    b1 = 0.1 * jax.random.normal(k_b1, (Cg,), jnp.float32)
    # nn.Conv2d(Cg, Cin, 3): weight (Cin, Cg, 3, 3), bias (Cin,)
    w2 = 0.1 * jax.random.normal(k_w2, (Cin, Cg, 3, 3), jnp.float32)
    b2 = 0.1 * jax.random.normal(k_b2, (Cin,), jnp.float32)
    # nn.PReLU(Cg) default init: 0.25 per channel
    alpha = jnp.full((Cg,), 0.25, jnp.float32)
    # common.Scale(1): scalar parameters initialized to 1.0
    s1 = jnp.float32(1.0)
    s2 = jnp.float32(1.0)

    out = one_conv_forward(x, w1, b1, alpha, w2, b2, s1, s2)
    out = jax.block_until_ready(out)

    ref = _reference_forward(x, w1, b1, alpha, w2, b2, s1, s2)
    assert out.shape == (N, Cin, H, W)
    assert jnp.allclose(out, ref, rtol=1e-4, atol=1e-4), (
        float(jnp.max(jnp.abs(out - ref))))

    print("KERNEL_OK")
</pallas_src>

<mosaic_0001>
module attributes {stable_mosaic.version = 11 : i64} {
  func.func @_one_conv_kernel(%arg0: i32, %arg1: memref<8x512xf32, #tpu.memory_space<vmem>>, %arg2: memref<8x512xf32, #tpu.memory_space<vmem>>, %arg3: memref<16x72xf32, #tpu.memory_space<vmem>>, %arg4: memref<8x3xf32, #tpu.memory_space<vmem>>, %arg5: memref<2xf32, #tpu.memory_space<smem>>, %arg6: memref<8x512xf32, #tpu.memory_space<vmem>>) attributes {dimension_semantics = [#tpu.dimension_semantics<parallel>], iteration_bounds = array<i64: 1>, scalar_prefetch = 0 : i64, scratch_operands = 0 : i64, tpu.core_type = #tpu.core_type<tc>, window_params = [{transform_indices = @transform_0, window_bounds = array<i64: 8, 512>}, {transform_indices = @transform_1, window_bounds = array<i64: 8, 512>}, {pipeline_mode = #tpu.pipeline_mode<synchronous>, transform_indices = @transform_2, window_bounds = array<i64: 16, 72>}, {pipeline_mode = #tpu.pipeline_mode<synchronous>, transform_indices = @transform_3, window_bounds = array<i64: 8, 3>}, {transform_indices = @transform_4, window_bounds = array<i64: 2>}, {transform_indices = @transform_5, window_bounds = array<i64: 8, 512>}]} {
    %c0 = arith.constant 0 : index
    %c0_0 = arith.constant 0 : index
    %0 = vector.load %arg1[%c0, %c0_0] : memref<8x512xf32, #tpu.memory_space<vmem>>, vector<8x512xf32>
    %c17_i32 = arith.constant 17 : i32
    %1 = tpu.dynamic_rotate %0 by %c17_i32 dim 1 : vector<8x512xf32>, i32 -> vector<8x512xf32>
    %c0_1 = arith.constant 0 : index
    %c0_2 = arith.constant 0 : index
    %2 = vector.load %arg2[%c0_1, %c0_2] : memref<8x512xf32, #tpu.memory_space<vmem>>, vector<1x512xf32>
    %3 = vector.broadcast %2 : vector<1x512xf32> to vector<8x512xf32>
    %4 = arith.mulf %1, %3 : vector<8x512xf32>
    %c16_i32 = arith.constant 16 : i32
    %5 = tpu.dynamic_rotate %0 by %c16_i32 dim 1 : vector<8x512xf32>, i32 -> vector<8x512xf32>
    %c1 = arith.constant 1 : index
    %c0_3 = arith.constant 0 : index
    %6 = vector.load %arg2[%c1, %c0_3] : memref<8x512xf32, #tpu.memory_space<vmem>>, vector<1x512xf32>
    %7 = vector.broadcast %6 : vector<1x512xf32> to vector<8x512xf32>
    %8 = arith.mulf %5, %7 : vector<8x512xf32>
    %c15_i32 = arith.constant 15 : i32
    %9 = tpu.dynamic_rotate %0 by %c15_i32 dim 1 : vector<8x512xf32>, i32 -> vector<8x512xf32>
    %c2 = arith.constant 2 : index
    %c0_4 = arith.constant 0 : index
    %10 = vector.load %arg2[%c2, %c0_4] : memref<8x512xf32, #tpu.memory_space<vmem>>, vector<1x512xf32>
    %11 = vector.broadcast %10 : vector<1x512xf32> to vector<8x512xf32>
    %12 = arith.mulf %9, %11 : vector<8x512xf32>
    %c1_i32 = arith.constant 1 : i32
    %13 = tpu.dynamic_rotate %0 by %c1_i32 dim 1 : vector<8x512xf32>, i32 -> vector<8x512xf32>
    %c3 = arith.constant 3 : index
    %c0_5 = arith.constant 0 : index
    %14 = vector.load %arg2[%c3, %c0_5] : memref<8x512xf32, #tpu.memory_space<vmem>>, vector<1x512xf32>
    %15 = vector.broadcast %14 : vector<1x512xf32> to vector<8x512xf32>
    %16 = arith.mulf %13, %15 : vector<8x512xf32>
    %c511_i32 = arith.constant 511 : i32
    %17 = tpu.dynamic_rotate %0 by %c511_i32 dim 1 : vector<8x512xf32>, i32 -> vector<8x512xf32>
    %c4 = arith.constant 4 : index
    %c0_6 = arith.constant 0 : index
    %18 = vector.load %arg2[%c4, %c0_6] : memref<8x512xf32, #tpu.memory_space<vmem>>, vector<1x512xf32>
    %19 = vector.broadcast %18 : vector<1x512xf32> to vector<8x512xf32>
    %20 = arith.mulf %17, %19 : vector<8x512xf32>
    %c497_i32 = arith.constant 497 : i32
    %21 = tpu.dynamic_rotate %0 by %c497_i32 dim 1 : vector<8x512xf32>, i32 -> vector<8x512xf32>
    %c5 = arith.constant 5 : index
    %c0_7 = arith.constant 0 : index
    %22 = vector.load %arg2[%c5, %c0_7] : memref<8x512xf32, #tpu.memory_space<vmem>>, vector<1x512xf32>
    %23 = vector.broadcast %22 : vector<1x512xf32> to vector<8x512xf32>
    %24 = arith.mulf %21, %23 : vector<8x512xf32>
    %c496_i32 = arith.constant 496 : i32
    %25 = tpu.dynamic_rotate %0 by %c496_i32 dim 1 : vector<8x512xf32>, i32 -> vector<8x512xf32>
    %c6 = arith.constant 6 : index
    %c0_8 = arith.constant 0 : index
    %26 = vector.load %arg2[%c6, %c0_8] : memref<8x512xf32, #tpu.memory_space<vmem>>, vector<1x512xf32>
    %27 = vector.broadcast %26 : vector<1x512xf32> to vector<8x512xf32>
    %28 = arith.mulf %25, %27 : vector<8x512xf32>
    %c495_i32 = arith.constant 495 : i32
    %29 = tpu.dynamic_rotate %0 by %c495_i32 dim 1 : vector<8x512xf32>, i32 -> vector<8x512xf32>
    %c7 = arith.constant 7 : index
    %c0_9 = arith.constant 0 : index
    %30 = vector.load %arg2[%c7, %c0_9] : memref<8x512xf32, #tpu.memory_space<vmem>>, vector<1x512xf32>
    %31 = vector.broadcast %30 : vector<1x512xf32> to vector<8x512xf32>
    %32 = arith.mulf %29, %31 : vector<8x512xf32>
    %33 = tpu.concatenate %4, %8, %12, %16, %0, %20, %24, %28, %32 in 0 : vector<8x512xf32>, vector<8x512xf32>, vector<8x512xf32>, vector<8x512xf32>, vector<8x512xf32>, vector<8x512xf32>, vector<8x512xf32>, vector<8x512xf32>, vector<8x512xf32> -> vector<72x512xf32>
    %c0_10 = arith.constant 0 : index
    %c0_11 = arith.constant 0 : index
    %34 = vector.load %arg3[%c0_10, %c0_11] : memref<16x72xf32, #tpu.memory_space<vmem>>, vector<8x72xf32>
    %cst = arith.constant dense<0.000000e+00> : vector<8x512xf32>
    %35 = tpu.matmul %34, %33, %cst {dimension_numbers = #tpu.dot_dimension_numbers<[1], [0], [0], [1], [0, 0, 1, 1], [], []>} : vector<8x72xf32>, vector<72x512xf32>, vector<8x512xf32> -> vector<8x512xf32>
    %c0_12 = arith.constant 0 : index
    %c0_13 = arith.constant 0 : index
    %36 = vector.load %arg4[%c0_12, %c0_13] : memref<8x3xf32, #tpu.memory_space<vmem>>, vector<8x1xf32>
    %37 = vector.broadcast %36 : vector<8x1xf32> to vector<8x512xf32>
    %38 = arith.addf %35, %37 : vector<8x512xf32>
    %c0_14 = arith.constant 0 : index
    %c1_15 = arith.constant 1 : index
    %39 = vector.load %arg4[%c0_14, %c1_15] : memref<8x3xf32, #tpu.memory_space<vmem>>, vector<8x1xf32>
    %cst_16 = arith.constant 0.000000e+00 : f32
    %40 = vector.broadcast %cst_16 : f32 to vector<8x512xf32>
    %41 = arith.cmpf oge, %38, %40 : vector<8x512xf32>
    %42 = vector.broadcast %39 : vector<8x1xf32> to vector<8x512xf32>
    %43 = arith.mulf %42, %38 : vector<8x512xf32>
    %44 = arith.select %41, %38, %43 : vector<8x512xi1>, vector<8x512xf32>
    %c17_i32_17 = arith.constant 17 : i32
    %45 = tpu.dynamic_rotate %44 by %c17_i32_17 dim 1 : vector<8x512xf32>, i32 -> vector<8x512xf32>
    %c0_18 = arith.constant 0 : index
    %c0_19 = arith.constant 0 : index
    %46 = vector.load %arg2[%c0_18, %c0_19] : memref<8x512xf32, #tpu.memory_space<vmem>>, vector<1x512xf32>
    %47 = vector.broadcast %46 : vector<1x512xf32> to vector<8x512xf32>
    %48 = arith.mulf %45, %47 : vector<8x512xf32>
    %c16_i32_20 = arith.constant 16 : i32
    %49 = tpu.dynamic_rotate %44 by %c16_i32_20 dim 1 : vector<8x512xf32>, i32 -> vector<8x512xf32>
    %c1_21 = arith.constant 1 : index
    %c0_22 = arith.constant 0 : index
    %50 = vector.load %arg2[%c1_21, %c0_22] : memref<8x512xf32, #tpu.memory_space<vmem>>, vector<1x512xf32>
    %51 = vector.broadcast %50 : vector<1x512xf32> to vector<8x512xf32>
    %52 = arith.mulf %49, %51 : vector<8x512xf32>
    %c15_i32_23 = arith.constant 15 : i32
    %53 = tpu.dynamic_rotate %44 by %c15_i32_23 dim 1 : vector<8x512xf32>, i32 -> vector<8x512xf32>
    %c2_24 = arith.constant 2 : index
    %c0_25 = arith.constant 0 : index
    %54 = vector.load %arg2[%c2_24, %c0_25] : memref<8x512xf32, #tpu.memory_space<vmem>>, vector<1x512xf32>
    %55 = vector.broadcast %54 : vector<1x512xf32> to vector<8x512xf32>
    %56 = arith.mulf %53, %55 : vector<8x512xf32>
    %c1_i32_26 = arith.constant 1 : i32
    %57 = tpu.dynamic_rotate %44 by %c1_i32_26 dim 1 : vector<8x512xf32>, i32 -> vector<8x512xf32>
    %c3_27 = arith.constant 3 : index
    %c0_28 = arith.constant 0 : index
    %58 = vector.load %arg2[%c3_27, %c0_28] : memref<8x512xf32, #tpu.memory_space<vmem>>, vector<1x512xf32>
    %59 = vector.broadcast %58 : vector<1x512xf32> to vector<8x512xf32>
    %60 = arith.mulf %57, %59 : vector<8x512xf32>
    %c511_i32_29 = arith.constant 511 : i32
    %61 = tpu.dynamic_rotate %44 by %c511_i32_29 dim 1 : vector<8x512xf32>, i32 -> vector<8x512xf32>
    %c4_30 = arith.constant 4 : index
    %c0_31 = arith.constant 0 : index
    %62 = vector.load %arg2[%c4_30, %c0_31] : memref<8x512xf32, #tpu.memory_space<vmem>>, vector<1x512xf32>
    %63 = vector.broadcast %62 : vector<1x512xf32> to vector<8x512xf32>
    %64 = arith.mulf %61, %63 : vector<8x512xf32>
    %c497_i32_32 = arith.constant 497 : i32
    %65 = tpu.dynamic_rotate %44 by %c497_i32_32 dim 1 : vector<8x512xf32>, i32 -> vector<8x512xf32>
    %c5_33 = arith.constant 5 : index
    %c0_34 = arith.constant 0 : index
    %66 = vector.load %arg2[%c5_33, %c0_34] : memref<8x512xf32, #tpu.memory_space<vmem>>, vector<1x512xf32>
    %67 = vector.broadcast %66 : vector<1x512xf32> to vector<8x512xf32>
    %68 = arith.mulf %65, %67 : vector<8x512xf32>
    %c496_i32_35 = arith.constant 496 : i32
    %69 = tpu.dynamic_rotate %44 by %c496_i32_35 dim 1 : vector<8x512xf32>, i32 -> vector<8x512xf32>
    %c6_36 = arith.constant 6 : index
    %c0_37 = arith.constant 0 : index
    %70 = vector.load %arg2[%c6_36, %c0_37] : memref<8x512xf32, #tpu.memory_space<vmem>>, vector<1x512xf32>
    %71 = vector.broadcast %70 : vector<1x512xf32> to vector<8x512xf32>
    %72 = arith.mulf %69, %71 : vector<8x512xf32>
    %c495_i32_38 = arith.constant 495 : i32
    %73 = tpu.dynamic_rotate %44 by %c495_i32_38 dim 1 : vector<8x512xf32>, i32 -> vector<8x512xf32>
    %c7_39 = arith.constant 7 : index
    %c0_40 = arith.constant 0 : index
    %74 = vector.load %arg2[%c7_39, %c0_40] : memref<8x512xf32, #tpu.memory_space<vmem>>, vector<1x512xf32>
    %75 = vector.broadcast %74 : vector<1x512xf32> to vector<8x512xf32>
    %76 = arith.mulf %73, %75 : vector<8x512xf32>
    %77 = tpu.concatenate %48, %52, %56, %60, %44, %64, %68, %72, %76 in 0 : vector<8x512xf32>, vector<8x512xf32>, vector<8x512xf32>, vector<8x512xf32>, vector<8x512xf32>, vector<8x512xf32>, vector<8x512xf32>, vector<8x512xf32>, vector<8x512xf32> -> vector<72x512xf32>
    %c8 = arith.constant 8 : index
    %c0_41 = arith.constant 0 : index
    %78 = vector.load %arg3[%c8, %c0_41] : memref<16x72xf32, #tpu.memory_space<vmem>>, vector<8x72xf32>
    %cst_42 = arith.constant dense<0.000000e+00> : vector<8x512xf32>
    %79 = tpu.matmul %78, %77, %cst_42 {dimension_numbers = #tpu.dot_dimension_numbers<[1], [0], [0], [1], [0, 0, 1, 1], [], []>} : vector<8x72xf32>, vector<72x512xf32>, vector<8x512xf32> -> vector<8x512xf32>
    %c0_43 = arith.constant 0 : index
    %c2_44 = arith.constant 2 : index
    %80 = vector.load %arg4[%c0_43, %c2_44] : memref<8x3xf32, #tpu.memory_space<vmem>>, vector<8x1xf32>
    %81 = vector.broadcast %80 : vector<8x1xf32> to vector<8x512xf32>
    %82 = arith.addf %79, %81 : vector<8x512xf32>
    %c0_45 = arith.constant 0 : index
    %83 = memref.load %arg5[%c0_45] : memref<2xf32, #tpu.memory_space<smem>>
    %84 = vector.broadcast %83 : f32 to vector<8x512xf32>
    %85 = arith.mulf %84, %0 : vector<8x512xf32>
    %c1_46 = arith.constant 1 : index
    %86 = memref.load %arg5[%c1_46] : memref<2xf32, #tpu.memory_space<smem>>
    %87 = vector.broadcast %86 : f32 to vector<8x512xf32>
    %88 = arith.mulf %87, %82 : vector<8x512xf32>
    %89 = arith.addf %85, %88 : vector<8x512xf32>
    %c0_47 = arith.constant 0 : index
    %c0_48 = arith.constant 0 : index
    %90 = vector.load %arg6[%c0_47, %c0_48] : memref<8x512xf32, #tpu.memory_space<vmem>>, vector<8x512xf32>
    tpu.vector_store %arg6[%c0_47, %c0_48], %89 {strides = array<i32>} : memref<8x512xf32, #tpu.memory_space<vmem>>, vector<8x512xf32>,
    return
  }
  func.func @transform_0(%arg0: i32) -> (i32, i32) {
    %c0_i32 = arith.constant 0 : i32
    %c0_i32_0 = arith.constant 0 : i32
    return %c0_i32, %arg0 : i32, i32
  }
  func.func @transform_1(%arg0: i32) -> (i32, i32) {
    %c0_i32 = arith.constant 0 : i32
    %c0_i32_0 = arith.constant 0 : i32
    return %c0_i32, %arg0 : i32, i32
  }
  func.func @transform_2(%arg0: i32) -> (i32, i32) {
    %c0_i32 = arith.constant 0 : i32
    %c0_i32_0 = arith.constant 0 : i32
    %c0_i32_1 = arith.constant 0 : i32
    return %c0_i32, %c0_i32_0 : i32, i32
  }
  func.func @transform_3(%arg0: i32) -> (i32, i32) {
    %c0_i32 = arith.constant 0 : i32
    %c0_i32_0 = arith.constant 0 : i32
    %c0_i32_1 = arith.constant 0 : i32
    return %c0_i32, %c0_i32_0 : i32, i32
  }
  func.func @transform_4(%arg0: i32) -> i32 {
    %c0_i32 = arith.constant 0 : i32
    %c0_i32_0 = arith.constant 0 : i32
    return %c0_i32 : i32
  }
  func.func @transform_5(%arg0: i32) -> (i32, i32) {
    %c0_i32 = arith.constant 0 : i32
    %c0_i32_0 = arith.constant 0 : i32
    return %c0_i32, %arg0 : i32, i32
  }
}

</mosaic_0001>

<llo_original>
// kernel: _one_conv_pallas.1
$region0: #{_one_conv_pallas.1}
  #allocation0 [shape = 'u32[]', space=smem, size = 0x4, offset = 0x4, fixed_abs, tag = 'smem constant byte address 0x4 - core index']
  #allocation1 [shape = 'u32[72,128]{1,0:T(1,128)}', space=vmem, size = 0x9000, scoped, tag = 'internal scratch']
  %s0 = inlined_call_operand.vmem [shape: f32[8,512], index: 0, kind: input, shape index: {}]
  %s1 = inlined_call_operand.vmem [shape: f32[8,512], index: 1, kind: input, shape index: {}]
  %s2 = inlined_call_operand.vmem [shape: f32[16,72], index: 2, kind: input, shape index: {}]
  %s3 = inlined_call_operand.vmem [shape: f32[8,3], index: 3, kind: input, shape index: {}]
  %s4 = inlined_call_operand.vmem [shape: f32[2], index: 4, kind: input, shape index: {}]
  %s5 = inlined_call_operand.vmem [shape: f32[8,512], index: 5, kind: output, shape index: {}]
  %s6 = sld [smem:[#allocation0]]
  $region34: #{_one_conv_pallas.1} parent=0
    _
  %s8 = ssub.s32 1, %s6
  %s9 = scalar_select 0, %s8, %s6
  $region1: #{_one_conv_pallas.1} parent=0
    #allocation2 [shape = 'u8[512]{0}', space=smem, size = 0x200, scoped, tag = 'input window, operand 4, single buffered']
    #allocation3 [shape = 's32[1]{0}', space=sflag, size = 0x4, scoped, tag = 'scoped memory for _one_conv_pallas.1']
    %10 = vsyncpa [#allocation3], 0
    // Predicated region
    $region2: #{_one_conv_pallas.1} parent=1 // pred_check
      _
    $region3: #{_one_conv_pallas.1} parent=1 // pred_check_branch
      %12 = sbr.rel (0) target = $region5
    $region4: #{_one_conv_pallas.1} parent=1 // pred_region
      _
    $region5: #{_one_conv_pallas.1} parent=1 // pred_fallthru
      _
    // Predicated region
    $region6: #{_one_conv_pallas.1} parent=1 // pred_check
      _
    $region7: #{_one_conv_pallas.1} parent=1 // pred_check_branch
      %14 = sbr.rel (0) target = $region9
    $region8: #{_one_conv_pallas.1} parent=1 // pred_region
      _
    $region9: #{_one_conv_pallas.1} parent=1 // pred_fallthru
      _
    // Predicated region
    $region10: #{_one_conv_pallas.1} parent=1 // pred_check
      _
    $region11: #{_one_conv_pallas.1} parent=1 // pred_check_branch
      %16 = sbr.rel (0) target = $region13
    $region12: #{_one_conv_pallas.1} parent=1 // pred_region
      _
    $region13: #{_one_conv_pallas.1} parent=1 // pred_fallthru
      _
    // Predicated region
    $region14: #{_one_conv_pallas.1} parent=1 // pred_check
      _
    $region15: #{_one_conv_pallas.1} parent=1 // pred_check_branch
      %18 = sbr.rel (0) target = $region17
    $region16: #{_one_conv_pallas.1} parent=1 // pred_region
      _
    $region17: #{_one_conv_pallas.1} parent=1 // pred_fallthru
      _
    // Predicated region
    $region18: #{_one_conv_pallas.1} parent=1 // pred_check
      _
    $region19: #{_one_conv_pallas.1} parent=1 // pred_check_branch
      %20 = sbr.rel (0) target = $region21
    $region20: #{_one_conv_pallas.1} parent=1 // pred_region
      %22 = vsyncadd [#allocation3], 0
      %s24 = sshll.u32 %s4, 4
      %s25 = int_to_ptr.vmem [resolvable:$true] %s24
      %27 = dma.vmem_to_smem %s25, 16, [#allocation2], [#allocation3]
    $region21: #{_one_conv_pallas.1} parent=1 // pred_fallthru
      _
    // Predicated region
    $region22: #{_one_conv_pallas.1} parent=1 // pred_check
      _
    $region23: #{_one_conv_pallas.1} parent=1 // pred_check_branch
      %29 = sbr.rel (0) target = $region25
    $region24: #{_one_conv_pallas.1} parent=1 // pred_region
      %31 = dma.done [#allocation3], 16
    $region25: #{_one_conv_pallas.1} parent=1 // pred_fallthru
      _
    %32 = sfence
    %v33 = vld [vmem:[%s0] sm:$0xff]
    %v34 = vld [vmem:[%s0 + $0x8] sm:$0xff]
    %v35 = vld [vmem:[%s0 + $0x10] sm:$0xff]
    %v36 = vld [vmem:[%s0 + $0x18] sm:$0xff]
    %37 = vrot.lane.b32.xlu0 %v33, 17
    %v38 = vpop.permute.xlu0 %37
    %39 = vrot.lane.b32.xlu0 %v34, 17
    %v40 = vpop.permute.xlu0 %39
    %41 = vrot.lane.b32.xlu0 %v35, 17
    %v42 = vpop.permute.xlu0 %41
    %43 = vrot.lane.b32.xlu0 %v36, 17
    %v44 = vpop.permute.xlu0 %43
    %v45 = vlaneseq
    %v46 = vand.u32 %v45, 127
    %vm47 = vcmp.lt.s32.totalorder %v46, 17
    %v48 = vsel %vm47, %v42, %v44
    %v49 = vsel %vm47, %v40, %v42
    %v50 = vsel %vm47, %v38, %v40
    %v51 = vsel %vm47, %v44, %v38
    %v52 = vld [vmem:[%s1] ss:$8 sm:$0xf]
    %v54 = vperm.slane %v52, 0
    %v55 = vperm.slane %v52, 1
    %v56 = vperm.slane %v52, 2
    %v57 = vperm.slane %v52, 3
    %v62 = vmul.f32 %v51, %v54
    %v63 = vmul.f32 %v50, %v55
    %v64 = vmul.f32 %v49, %v56
    %v65 = vmul.f32 %v48, %v57
    %66 = vrot.lane.b32.xlu0 %v33, 16
    %v67 = vpop.permute.xlu0 %66
    %68 = vrot.lane.b32.xlu0 %v34, 16
    %v69 = vpop.permute.xlu0 %68
    %70 = vrot.lane.b32.xlu0 %v35, 16
    %v71 = vpop.permute.xlu0 %70
    %72 = vrot.lane.b32.xlu0 %v36, 16
    %v73 = vpop.permute.xlu0 %72
    %vm74 = vcmp.lt.s32.totalorder %v46, 16
    %v75 = vsel %vm74, %v71, %v73
    %v76 = vsel %vm74, %v69, %v71
    %v77 = vsel %vm74, %v67, %v69
    %v78 = vsel %vm74, %v73, %v67
    %s79 = scalar_lea.vmem %s1, 1
    %v80 = vld [vmem:[%s79] ss:$8 sm:$0xf]
    %v82 = vperm.slane %v80, 0
    %v83 = vperm.slane %v80, 1
    %v84 = vperm.slane %v80, 2
    %v85 = vperm.slane %v80, 3
    %v90 = vmul.f32 %v78, %v82
    %v91 = vmul.f32 %v77, %v83
    %v92 = vmul.f32 %v76, %v84
    %v93 = vmul.f32 %v75, %v85
    %94 = vrot.lane.b32.xlu0 %v33, 15
    %v95 = vpop.permute.xlu0 %94
    %96 = vrot.lane.b32.xlu0 %v34, 15
    %v97 = vpop.permute.xlu0 %96
    %98 = vrot.lane.b32.xlu0 %v35, 15
    %v99 = vpop.permute.xlu0 %98
    %100 = vrot.lane.b32.xlu0 %v36, 15
    %v101 = vpop.permute.xlu0 %100
    %vm102 = vcmp.lt.s32.totalorder %v46, 15
    %v103 = vsel %vm102, %v99, %v101
    %v104 = vsel %vm102, %v97, %v99
    %v105 = vsel %vm102, %v95, %v97
    %v106 = vsel %vm102, %v101, %v95
    %s107 = scalar_lea.vmem %s1, 2
    %v108 = vld [vmem:[%s107] ss:$8 sm:$0xf]
    %v110 = vperm.slane %v108, 0
    %v111 = vperm.slane %v108, 1
    %v112 = vperm.slane %v108, 2
    %v113 = vperm.slane %v108, 3
    %v118 = vmul.f32 %v106, %v110
    %v119 = vmul.f32 %v105, %v111
    %v120 = vmul.f32 %v104, %v112
    %v121 = vmul.f32 %v103, %v113
    %122 = vrot.lane.b32.xlu0 %v33, 1
    %v123 = vpop.permute.xlu0 %122
    %124 = vrot.lane.b32.xlu0 %v34, 1
    %v125 = vpop.permute.xlu0 %124
    %126 = vrot.lane.b32.xlu0 %v35, 1
    %v127 = vpop.permute.xlu0 %126
    %128 = vrot.lane.b32.xlu0 %v36, 1
    %v129 = vpop.permute.xlu0 %128
    %vm130 = vcmp.lt.s32.totalorder %v46, 1
    %v131 = vsel %vm130, %v127, %v129
    %v132 = vsel %vm130, %v125, %v127
    %v133 = vsel %vm130, %v123, %v125
    %v134 = vsel %vm130, %v129, %v123
    %s135 = scalar_lea.vmem %s1, 3
    %v136 = vld [vmem:[%s135] ss:$8 sm:$0xf]
    %v138 = vperm.slane %v136, 0
    %v139 = vperm.slane %v136, 1
    %v140 = vperm.slane %v136, 2
    %v141 = vperm.slane %v136, 3
    %v146 = vmul.f32 %v134, %v138
    %v147 = vmul.f32 %v133, %v139
    %v148 = vmul.f32 %v132, %v140
    %v149 = vmul.f32 %v131, %v141
    %150 = vrot.lane.b32.xlu0 %v33, 127
    %v151 = vpop.permute.xlu0 %150
    %152 = vrot.lane.b32.xlu0 %v34, 127
    %v153 = vpop.permute.xlu0 %152
    %154 = vrot.lane.b32.xlu0 %v35, 127
    %v155 = vpop.permute.xlu0 %154
    %156 = vrot.lane.b32.xlu0 %v36, 127
    %v157 = vpop.permute.xlu0 %156
    %vm158 = vcmp.lt.s32.totalorder %v46, 127
    %v159 = vsel %vm158, %v155, %v157
    %v160 = vsel %vm158, %v153, %v155
    %v161 = vsel %vm158, %v151, %v153
    %v162 = vsel %vm158, %v157, %v151
    %s163 = scalar_lea.vmem %s1, 4
    %v164 = vld [vmem:[%s163] ss:$8 sm:$0xf]
    %v166 = vperm.slane %v164, 0
    %v167 = vperm.slane %v164, 1
    %v168 = vperm.slane %v164, 2
    %v169 = vperm.slane %v164, 3
    %v174 = vmul.f32 %v161, %v166
    %v175 = vmul.f32 %v160, %v167
    %v176 = vmul.f32 %v159, %v168
    %v177 = vmul.f32 %v162, %v169
    %178 = vrot.lane.b32.xlu0 %v33, 113
    %v179 = vpop.permute.xlu0 %178
    %180 = vrot.lane.b32.xlu0 %v34, 113
    %v181 = vpop.permute.xlu0 %180
    %182 = vrot.lane.b32.xlu0 %v35, 113
    %v183 = vpop.permute.xlu0 %182
    %184 = vrot.lane.b32.xlu0 %v36, 113
    %v185 = vpop.permute.xlu0 %184
    %vm186 = vcmp.lt.s32.totalorder %v46, 113
    %v187 = vsel %vm186, %v183, %v185
    %v188 = vsel %vm186, %v181, %v183
    %v189 = vsel %vm186, %v179, %v181
    %v190 = vsel %vm186, %v185, %v179
    %s191 = scalar_lea.vmem %s1, 5
    %v192 = vld [vmem:[%s191] ss:$8 sm:$0xf]
    %v194 = vperm.slane %v192, 0
    %v195 = vperm.slane %v192, 1
    %v196 = vperm.slane %v192, 2
    %v197 = vperm.slane %v192, 3
    %v202 = vmul.f32 %v189, %v194
    %v203 = vmul.f32 %v188, %v195
    %v204 = vmul.f32 %v187, %v196
    %v205 = vmul.f32 %v190, %v197
    %206 = vrot.lane.b32.xlu0 %v33, 112
    %v207 = vpop.permute.xlu0 %206
    %208 = vrot.lane.b32.xlu0 %v34, 112
    %v209 = vpop.permute.xlu0 %208
    %210 = vrot.lane.b32.xlu0 %v35, 112
    %v211 = vpop.permute.xlu0 %210
    %212 = vrot.lane.b32.xlu0 %v36, 112
    %v213 = vpop.permute.xlu0 %212
    %vm214 = vcmp.lt.s32.totalorder %v46, 112
    %v215 = vsel %vm214, %v211, %v213
    %v216 = vsel %vm214, %v209, %v211
    %v217 = vsel %vm214, %v207, %v209
    %v218 = vsel %vm214, %v213, %v207
    %s219 = scalar_lea.vmem %s1, 6
    %v220 = vld [vmem:[%s219] ss:$8 sm:$0xf]
    %v222 = vperm.slane %v220, 0
    %v223 = vperm.slane %v220, 1
    %v224 = vperm.slane %v220, 2
    %v225 = vperm.slane %v220, 3
    %v230 = vmul.f32 %v217, %v222
    %v231 = vmul.f32 %v216, %v223
    %v232 = vmul.f32 %v215, %v224
    %v233 = vmul.f32 %v218, %v225
    %234 = vrot.lane.b32.xlu0 %v33, 111
    %v235 = vpop.permute.xlu0 %234
    %236 = vrot.lane.b32.xlu0 %v34, 111
    %v237 = vpop.permute.xlu0 %236
    %238 = vrot.lane.b32.xlu0 %v35, 111
    %v239 = vpop.permute.xlu0 %238
    %240 = vrot.lane.b32.xlu0 %v36, 111
    %v241 = vpop.permute.xlu0 %240
    %vm242 = vcmp.lt.s32.totalorder %v46, 111
    %v243 = vsel %vm242, %v239, %v241
    %v244 = vsel %vm242, %v237, %v239
    %v245 = vsel %vm242, %v235, %v237
    %v246 = vsel %vm242, %v241, %v235
    %s247 = scalar_lea.vmem %s1, 7
    %v248 = vld [vmem:[%s247] ss:$8 sm:$0xf]
    %v250 = vperm.slane %v248, 0
    %v251 = vperm.slane %v248, 1
    %v252 = vperm.slane %v248, 2
    %v253 = vperm.slane %v248, 3
    %v258 = vmul.f32 %v245, %v250
    %v259 = vmul.f32 %v244, %v251
    %v260 = vmul.f32 %v243, %v252
    %v261 = vmul.f32 %v246, %v253
    %v262 = vld [vmem:[%s2] sm:$0xff]
    %v263 = vld [vmem:[%s3] sm:$0xff]
    %265 = vset.pattern.permute.xlu0 0
    %266 = vperm.xlu0 %265, %v263
    %v267 = vpop.permute.xlu0 %266
    %vm269 = vcmask 588800
    %v271 = vsel %vm269, %v262, 0
    %273 = vmatpush.msra.mxu0 0.0
    %274 = vmatpush.msra.mxu0 0.0
    %275 = vmatpush.msra.mxu0 0.0
    %276 = vmatpush.msra.mxu0 0.0
    %277 = vmatpush.msra.mxu0 0.0
    %278 = vmatpush.msra.mxu0 0.0
    %279 = vmatpush.msra.mxu0 0.0
    %280 = vmatpush.msra.mxu0 %v258
    %281 = vmatpush.msra.mxu0 %v230
    %282 = vmatpush.msra.mxu0 %v202
    %283 = vmatpush.msra.mxu0 %v174
    %284 = vmatpush.msra.mxu0 %v33
    %285 = vmatpush.msra.mxu0 %v146
    %286 = vmatpush.msra.mxu0 %v118
    %287 = vmatpush.msra.mxu0 %v90
    %288 = vmatpush.msra.mxu0 %v62
    %289 = vmatmul.f32.gmra.mxu0 %v271
    %v290 = vpop.f32.mrf.mxu0
    %v291 = vadd.f32 %v267, %v290
    %292 = vdwg.mxu0
    %293 = vmatpush.msra.mxu0 0.0
    %294 = vmatpush.msra.mxu0 0.0
    %295 = vmatpush.msra.mxu0 0.0
    %296 = vmatpush.msra.mxu0 0.0
    %297 = vmatpush.msra.mxu0 0.0
    %298 = vmatpush.msra.mxu0 0.0
    %299 = vmatpush.msra.mxu0 0.0
    %300 = vmatpush.msra.mxu0 %v259
    %301 = vmatpush.msra.mxu0 %v231
    %302 = vmatpush.msra.mxu0 %v203
    %303 = vmatpush.msra.mxu0 %v175
    %304 = vmatpush.msra.mxu0 %v34
    %305 = vmatpush.msra.mxu0 %v147
    %306 = vmatpush.msra.mxu0 %v119
    %307 = vmatpush.msra.mxu0 %v91
    %308 = vmatpush.msra.mxu0 %v63
    %309 = vmatmul.f32.gmra.mxu0 %v271
    %v310 = vpop.f32.mrf.mxu0
    %v311 = vadd.f32 %v267, %v310
    %312 = vdwg.mxu0
    %313 = vmatpush.msra.mxu0 0.0
    %314 = vmatpush.msra.mxu0 0.0
    %315 = vmatpush.msra.mxu0 0.0
    %316 = vmatpush.msra.mxu0 0.0
    %317 = vmatpush.msra.mxu0 0.0
    %318 = vmatpush.msra.mxu0 0.0
    %319 = vmatpush.msra.mxu0 0.0
    %320 = vmatpush.msra.mxu0 %v260
    %321 = vmatpush.msra.mxu0 %v232
    %322 = vmatpush.msra.mxu0 %v204
    %323 = vmatpush.msra.mxu0 %v176
    %324 = vmatpush.msra.mxu0 %v35
    %325 = vmatpush.msra.mxu0 %v148
    %326 = vmatpush.msra.mxu0 %v120
    %327 = vmatpush.msra.mxu0 %v92
    %328 = vmatpush.msra.mxu0 %v64
    %329 = vmatmul.f32.gmra.mxu0 %v271
    %v330 = vpop.f32.mrf.mxu0
    %v331 = vadd.f32 %v267, %v330
    %332 = vdwg.mxu0
    %333 = vmatpush.msra.mxu0 0.0
    %334 = vmatpush.msra.mxu0 0.0
    %335 = vmatpush.msra.mxu0 0.0
    %336 = vmatpush.msra.mxu0 0.0
    %337 = vmatpush.msra.mxu0 0.0
    %338 = vmatpush.msra.mxu0 0.0
    %339 = vmatpush.msra.mxu0 0.0
    %340 = vmatpush.msra.mxu0 %v261
    %341 = vmatpush.msra.mxu0 %v233
    %342 = vmatpush.msra.mxu0 %v205
    %343 = vmatpush.msra.mxu0 %v177
    %344 = vmatpush.msra.mxu0 %v36
    %345 = vmatpush.msra.mxu0 %v149
    %346 = vmatpush.msra.mxu0 %v121
    %347 = vmatpush.msra.mxu0 %v93
    %348 = vmatpush.msra.mxu0 %v65
    %349 = vmatmul.f32.gmra.mxu0 %v271
    %v350 = vpop.f32.mrf.mxu0
    %v351 = vadd.f32 %v267, %v350
    %352 = vdwg.mxu0
    %vm353 = vcmp.ge.f32.partialorder %v291, 0.0
    %vm354 = vcmp.ge.f32.partialorder %v311, 0.0
    %vm355 = vcmp.ge.f32.partialorder %v331, 0.0
    %vm356 = vcmp.ge.f32.partialorder %v351, 0.0
    %357 = vset.pattern.permute.xlu0 1
    %358 = vperm.xlu0 %357, %v263
    %v359 = vpop.permute.xlu0 %358
    %v361 = vmul.f32 %v359, %v291
    %v362 = vmul.f32 %v359, %v311
    %v363 = vmul.f32 %v359, %v331
    %v364 = vmul.f32 %v359, %v351
    %v365 = vsel %vm353, %v291, %v361
    %v366 = vsel %vm354, %v311, %v362
    %v367 = vsel %vm355, %v331, %v363
    %v368 = vsel %vm356, %v351, %v364
    %369 = vrot.lane.b32.xlu0 %v365, 17
    %v370 = vpop.permute.xlu0 %369
    %371 = vrot.lane.b32.xlu0 %v366, 17
    %v372 = vpop.permute.xlu0 %371
    %373 = vrot.lane.b32.xlu0 %v367, 17
    %v374 = vpop.permute.xlu0 %373
    %375 = vrot.lane.b32.xlu0 %v368, 17
    %v376 = vpop.permute.xlu0 %375
    %v377 = vsel %vm47, %v374, %v376
    %v378 = vsel %vm47, %v372, %v374
    %v379 = vsel %vm47, %v370, %v372
    %v380 = vsel %vm47, %v376, %v370
    %v381 = vmul.f32 %v380, %v54
    %v382 = vmul.f32 %v379, %v55
    %v383 = vmul.f32 %v378, %v56
    %v384 = vmul.f32 %v377, %v57
    %385 = vrot.lane.b32.xlu0 %v365, 16
    %v386 = vpop.permute.xlu0 %385
    %387 = vrot.lane.b32.xlu0 %v366, 16
    %v388 = vpop.permute.xlu0 %387
    %389 = vrot.lane.b32.xlu0 %v367, 16
    %v390 = vpop.permute.xlu0 %389
    %391 = vrot.lane.b32.xlu0 %v368, 16
    %v392 = vpop.permute.xlu0 %391
    %v393 = vsel %vm74, %v390, %v392
    %v394 = vsel %vm74, %v388, %v390
    %v395 = vsel %vm74, %v386, %v388
    %v396 = vsel %vm74, %v392, %v386
    %v397 = vmul.f32 %v396, %v82
    %v398 = vmul.f32 %v395, %v83
    %v399 = vmul.f32 %v394, %v84
    %v400 = vmul.f32 %v393, %v85
    %401 = vrot.lane.b32.xlu0 %v365, 15
    %v402 = vpop.permute.xlu0 %401
    %403 = vrot.lane.b32.xlu0 %v366, 15
    %v404 = vpop.permute.xlu0 %403
    %405 = vrot.lane.b32.xlu0 %v367, 15
    %v406 = vpop.permute.xlu0 %405
    %407 = vrot.lane.b32.xlu0 %v368, 15
    %v408 = vpop.permute.xlu0 %407
    %v409 = vsel %vm102, %v406, %v408
    %v410 = vsel %vm102, %v404, %v406
    %v411 = vsel %vm102, %v402, %v404
    %v412 = vsel %vm102, %v408, %v402
    %v413 = vmul.f32 %v412, %v110
    %v414 = vmul.f32 %v411, %v111
    %v415 = vmul.f32 %v410, %v112
    %v416 = vmul.f32 %v409, %v113
    %417 = vrot.lane.b32.xlu0 %v365, 1
    %v418 = vpop.permute.xlu0 %417
    %419 = vrot.lane.b32.xlu0 %v366, 1
    %v420 = vpop.permute.xlu0 %419
    %421 = vrot.lane.b32.xlu0 %v367, 1
    %v422 = vpop.permute.xlu0 %421
    %423 = vrot.lane.b32.xlu0 %v368, 1
    %v424 = vpop.permute.xlu0 %423
    %v425 = vsel %vm130, %v422, %v424
    %v426 = vsel %vm130, %v420, %v422
    %v427 = vsel %vm130, %v418, %v420
    %v428 = vsel %vm130, %v424, %v418
    %v429 = vmul.f32 %v428, %v138
    %v430 = vmul.f32 %v427, %v139
    %v431 = vmul.f32 %v426, %v140
    %v432 = vmul.f32 %v425, %v141
    %433 = vrot.lane.b32.xlu0 %v365, 127
    %v434 = vpop.permute.xlu0 %433
    %435 = vrot.lane.b32.xlu0 %v366, 127
    %v436 = vpop.permute.xlu0 %435
    %437 = vrot.lane.b32.xlu0 %v367, 127
    %v438 = vpop.permute.xlu0 %437
    %439 = vrot.lane.b32.xlu0 %v368, 127
    %v440 = vpop.permute.xlu0 %439
    %v441 = vsel %vm158, %v438, %v440
    %v442 = vsel %vm158, %v436, %v438
    %v443 = vsel %vm158, %v434, %v436
    %v444 = vsel %vm158, %v440, %v434
    %v445 = vmul.f32 %v443, %v166
    %v446 = vmul.f32 %v442, %v167
    %v447 = vmul.f32 %v441, %v168
    %v448 = vmul.f32 %v444, %v169
    %449 = vrot.lane.b32.xlu0 %v365, 113
    %v450 = vpop.permute.xlu0 %449
    %451 = vrot.lane.b32.xlu0 %v366, 113
    %v452 = vpop.permute.xlu0 %451
    %453 = vrot.lane.b32.xlu0 %v367, 113
    %v454 = vpop.permute.xlu0 %453
    %455 = vrot.lane.b32.xlu0 %v368, 113
    %v456 = vpop.permute.xlu0 %455
    %v457 = vsel %vm186, %v454, %v456
    %v458 = vsel %vm186, %v452, %v454
    %v459 = vsel %vm186, %v450, %v452
    %v460 = vsel %vm186, %v456, %v450
    %v461 = vmul.f32 %v459, %v194
    %v462 = vmul.f32 %v458, %v195
    %v463 = vmul.f32 %v457, %v196
    %v464 = vmul.f32 %v460, %v197
    %465 = vrot.lane.b32.xlu0 %v365, 112
    %v466 = vpop.permute.xlu0 %465
    %467 = vrot.lane.b32.xlu0 %v366, 112
    %v468 = vpop.permute.xlu0 %467
    %469 = vrot.lane.b32.xlu0 %v367, 112
    %v470 = vpop.permute.xlu0 %469
    %471 = vrot.lane.b32.xlu0 %v368, 112
    %v472 = vpop.permute.xlu0 %471
    %v473 = vsel %vm214, %v470, %v472
    %v474 = vsel %vm214, %v468, %v470
    %v475 = vsel %vm214, %v466, %v468
    %v476 = vsel %vm214, %v472, %v466
    %v477 = vmul.f32 %v475, %v222
    %v478 = vmul.f32 %v474, %v223
    %v479 = vmul.f32 %v473, %v224
    %v480 = vmul.f32 %v476, %v225
    %481 = vrot.lane.b32.xlu0 %v365, 111
    %v482 = vpop.permute.xlu0 %481
    %483 = vrot.lane.b32.xlu0 %v366, 111
    %v484 = vpop.permute.xlu0 %483
    %485 = vrot.lane.b32.xlu0 %v367, 111
    %v486 = vpop.permute.xlu0 %485
    %487 = vrot.lane.b32.xlu0 %v368, 111
    %v488 = vpop.permute.xlu0 %487
    %v489 = vsel %vm242, %v486, %v488
    %v490 = vsel %vm242, %v484, %v486
    %v491 = vsel %vm242, %v482, %v484
    %v492 = vsel %vm242, %v488, %v482
    %v493 = vmul.f32 %v491, %v250
    %v494 = vmul.f32 %v490, %v251
    %v495 = vmul.f32 %v489, %v252
    %v496 = vmul.f32 %v492, %v253
    %v497 = vld [vmem:[%s2 + $0x8] sm:$0xff]
    %498 = vset.pattern.permute.xlu0 2
    %499 = vperm.xlu0 %498, %v263
    %v500 = vpop.permute.xlu0 %499
    %v503 = vsel %vm269, %v497, 0
    %505 = vmatpush.msra.mxu0 0.0
    %506 = vmatpush.msra.mxu0 0.0
    %507 = vmatpush.msra.mxu0 0.0
    %508 = vmatpush.msra.mxu0 0.0
    %509 = vmatpush.msra.mxu0 0.0
    %510 = vmatpush.msra.mxu0 0.0
    %511 = vmatpush.msra.mxu0 0.0
    %512 = vmatpush.msra.mxu0 %v493
    %513 = vmatpush.msra.mxu0 %v477
    %514 = vmatpush.msra.mxu0 %v461
    %515 = vmatpush.msra.mxu0 %v445
    %516 = vmatpush.msra.mxu0 %v365
    %517 = vmatpush.msra.mxu0 %v429
    %518 = vmatpush.msra.mxu0 %v413
    %519 = vmatpush.msra.mxu0 %v397
    %520 = vmatpush.msra.mxu0 %v381
    %521 = vmatmul.f32.gmra.mxu0 %v503
    %v522 = vpop.f32.mrf.mxu0
    %v523 = vadd.f32 %v500, %v522
    %524 = vdwg.mxu0
    %525 = vmatpush.msra.mxu0 0.0
    %526 = vmatpush.msra.mxu0 0.0
    %527 = vmatpush.msra.mxu0 0.0
    %528 = vmatpush.msra.mxu0 0.0
    %529 = vmatpush.msra.mxu0 0.0
    %530 = vmatpush.msra.mxu0 0.0
    %531 = vmatpush.msra.mxu0 0.0
    %532 = vmatpush.msra.mxu0 %v494
    %533 = vmatpush.msra.mxu0 %v478
    %534 = vmatpush.msra.mxu0 %v462
    %535 = vmatpush.msra.mxu0 %v446
    %536 = vmatpush.msra.mxu0 %v366
    %537 = vmatpush.msra.mxu0 %v430
    %538 = vmatpush.msra.mxu0 %v414
    %539 = vmatpush.msra.mxu0 %v398
    %540 = vmatpush.msra.mxu0 %v382
    %541 = vmatmul.f32.gmra.mxu0 %v503
    %v542 = vpop.f32.mrf.mxu0
    %v543 = vadd.f32 %v500, %v542
    %544 = vdwg.mxu0
    %545 = vmatpush.msra.mxu0 0.0
    %546 = vmatpush.msra.mxu0 0.0
    %547 = vmatpush.msra.mxu0 0.0
    %548 = vmatpush.msra.mxu0 0.0
    %549 = vmatpush.msra.mxu0 0.0
    %550 = vmatpush.msra.mxu0 0.0
    %551 = vmatpush.msra.mxu0 0.0
    %552 = vmatpush.msra.mxu0 %v495
    %553 = vmatpush.msra.mxu0 %v479
    %554 = vmatpush.msra.mxu0 %v463
    %555 = vmatpush.msra.mxu0 %v447
    %556 = vmatpush.msra.mxu0 %v367
    %557 = vmatpush.msra.mxu0 %v431
    %558 = vmatpush.msra.mxu0 %v415
    %559 = vmatpush.msra.mxu0 %v399
    %560 = vmatpush.msra.mxu0 %v383
    %561 = vmatmul.f32.gmra.mxu0 %v503
    %v562 = vpop.f32.mrf.mxu0
    %v563 = vadd.f32 %v500, %v562
    %564 = vdwg.mxu0
    %565 = vmatpush.msra.mxu0 0.0
    %566 = vmatpush.msra.mxu0 0.0
    %567 = vmatpush.msra.mxu0 0.0
    %568 = vmatpush.msra.mxu0 0.0
    %569 = vmatpush.msra.mxu0 0.0
    %570 = vmatpush.msra.mxu0 0.0
    %571 = vmatpush.msra.mxu0 0.0
    %572 = vmatpush.msra.mxu0 %v496
    %573 = vmatpush.msra.mxu0 %v480
    %574 = vmatpush.msra.mxu0 %v464
    %575 = vmatpush.msra.mxu0 %v448
    %576 = vmatpush.msra.mxu0 %v368
    %577 = vmatpush.msra.mxu0 %v432
    %578 = vmatpush.msra.mxu0 %v416
    %579 = vmatpush.msra.mxu0 %v400
    %580 = vmatpush.msra.mxu0 %v384
    %581 = vmatmul.f32.gmra.mxu0 %v503
    %v582 = vpop.f32.mrf.mxu0
    %v583 = vadd.f32 %v500, %v582
    %584 = vdwg.mxu0
    %s585 = sld [smem:[#allocation2]]
    %v586 = vstv %s585
    %v587 = vmul.f32 %v586, %v33
    %v588 = vmul.f32 %v586, %v34
    %v589 = vmul.f32 %v586, %v35
    %v590 = vmul.f32 %v586, %v36
    %s591 = sld [smem:[#allocation2 + $0x1]]
    %v592 = vstv %s591
    %v593 = vmul.f32 %v592, %v523
    %v594 = vmul.f32 %v592, %v543
    %v595 = vmul.f32 %v592, %v563
    %v596 = vmul.f32 %v592, %v583
    %v597 = vadd.f32 %v587, %v593
    %v598 = vadd.f32 %v588, %v594
    %v599 = vadd.f32 %v589, %v595
    %v600 = vadd.f32 %v590, %v596
    %601 = vst [vmem:[%s5] sm:$0xff] %v597
    %602 = vst [vmem:[%s5 + $0x8] sm:$0xff] %v598
    %603 = vst [vmem:[%s5 + $0x10] sm:$0xff] %v599
    %604 = vst [vmem:[%s5 + $0x18] sm:$0xff] %v600
    // Predicated region
    $region26: #{_one_conv_pallas.1} parent=1 // pred_check
      _
    $region27: #{_one_conv_pallas.1} parent=1 // pred_check_branch
      %606 = sbr.rel (0) target = $region29
    $region28: #{_one_conv_pallas.1} parent=1 // pred_region
      _
    $region29: #{_one_conv_pallas.1} parent=1 // pred_fallthru
      _
    // Predicated region
    $region30: #{_one_conv_pallas.1} parent=1 // pred_check
      _
    $region31: #{_one_conv_pallas.1} parent=1 // pred_check_branch
      %608 = sbr.rel (0) target = $region33
    $region32: #{_one_conv_pallas.1} parent=1 // pred_region
      _
    $region33: #{_one_conv_pallas.1} parent=1 // pred_fallthru
      _
    %609 = vsyncpa [#allocation3], 1

</llo_original>
